<compile_context>
chip_gen: v7x
topology: tpu7x:2x2x1
jax: 0.10.0
libtpu: 0.0.40
codegen_flags: <defaults>
</compile_context>

<pallas_src>
import math

import jax
import jax.numpy as jnp
from jax.experimental import pallas as pl
from jax.experimental.pallas import tpu as pltpu


# ----------------------------------------------------------------------------
# Pallas identity-copy kernel (only used when force_copy=True)
# ----------------------------------------------------------------------------
def _copy_kernel(x_ref, o_ref):
    o_ref[...] = x_ref[...]


def _sublane_multiple(itemsize: int) -> int:
    """Rows per vreg: 8 for 32-bit, 16 for bf16/f16, 32 for int8/fp8."""
    return 8 * max(1, 4 // max(1, itemsize))


def _device_budget():
    """(per-block byte budget, vmem_limit_bytes) tuned per TPU generation."""
    try:
        kind = jax.devices()[0].device_kind.lower()
    except Exception:  # no device info -> conservative defaults
        kind = ""
    if "v6" in kind:
        # v6e: most VMEM headroom (128 MiB physical); 8 MiB blocks, 64 MiB scoped.
        return 8 * 1024 * 1024, 64 * 1024 * 1024
    if "v7" in kind:
        # v7x: only 64 MiB physical VMEM; keep blocks <= ~7 MiB, 32 MiB scoped.
        return 7 * 1024 * 1024, 32 * 1024 * 1024
    # v5e / unknown: 3.5 MiB blocks (4x double-buffered = 14 MiB), 32 MiB scoped.
    return 3 * 1024 * 1024 + 512 * 1024, 32 * 1024 * 1024


def _choose_lane(total: int, mult: int):
    """Widest lane count in {2048..128} dividing `total`; prefer one whose
    row count is a multiple of the dtype's sublane packing.  None if total is
    not a multiple of 128 (caller falls back to metadata reshape)."""
    candidates = (2048, 1024, 512, 256, 128)
    for cand in candidates:
        if total % cand == 0 and (total // cand) % mult == 0:
            return cand
    for cand in candidates:
        if total % cand == 0:
            return cand
    return None


def _choose_tile_rows(rows: int, lane: int, itemsize: int, budget_bytes: int) -> int:
    """Pick tile_rows: exact divisor of rows, multiple of the sublane packing,
    <= the per-generation byte budget, and (when rows allow) <= rows//2 so the
    grid has >= 2 blocks for the v7x megacore."""
    mult = _sublane_multiple(itemsize)
    if rows < 2 * mult:
        # Too small to split; a single block equal to the full array shape is
        # always a legal BlockSpec.
        return rows
    budget_rows = max(mult, budget_bytes // (lane * itemsize))
    cap = min(budget_rows, rows // 2)   # guarantee >= 2 grid blocks
    cap = min(max(cap, mult), rows)
    # Prefer an exact divisor of `rows` (no ragged masked-store final block).
    for cand in range(cap - cap % mult, 0, -mult):
        if rows % cand == 0:
            return cand
    # No aligned divisor: largest aligned tile (Pallas masks the last block).
    aligned = cap - cap % mult
    return aligned if aligned > 0 else rows


def _pallas_tiled_copy(flat2d: jnp.ndarray, tile_rows: int,
                       vmem_limit_bytes: int) -> jnp.ndarray:
    """Tiled, pipelined identity copy of a lane-dense 2-D slab."""
    rows, lane = flat2d.shape
    itemsize = jnp.dtype(flat2d.dtype).itemsize
    grid = (pl.cdiv(rows, tile_rows),)
    return pl.pallas_call(
        _copy_kernel,
        out_shape=jax.ShapeDtypeStruct((rows, lane), flat2d.dtype),
        grid=grid,
        in_specs=[pl.BlockSpec((tile_rows, lane), lambda i: (i, 0))],
        out_specs=pl.BlockSpec((tile_rows, lane), lambda i: (i, 0)),
        compiler_params=pltpu.CompilerParams(
            # Independent tiles -> shard across TensorCores (v7x megacore).
            dimension_semantics=("parallel",),
            vmem_limit_bytes=vmem_limit_bytes,
        ),
        cost_estimate=pl.CostEstimate(
            flops=0,
            transcendentals=0,
            bytes_accessed=2 * rows * lane * itemsize,
        ),
    )(flat2d)


# ----------------------------------------------------------------------------
# Public entry point: equivalent of Reshape(shape).forward(x)
# ----------------------------------------------------------------------------
def reshape_forward(x: jnp.ndarray, shape, force_copy: bool = False) -> jnp.ndarray:
    """x.reshape(shape).  Default: pure metadata reshape (zero HBM traffic).

    force_copy=True routes the flattened buffer through a Pallas identity-copy
    kernel (benchmark / demonstration only)."""
    total = math.prod(x.shape)

    # Resolve a single -1 in the target shape, like torch.reshape does.
    shape = list(shape)
    if -1 in shape:
        neg_idx = shape.index(-1)
        known = math.prod([s for s in shape if s != -1])
        shape[neg_idx] = total // known
    assert math.prod(shape) == total, "reshape: element count mismatch"
    shape = tuple(shape)

    if not force_copy:
        # Reshape is metadata-only: the fastest kernel is no kernel at all.
        return jnp.reshape(x, shape)

    itemsize = jnp.dtype(x.dtype).itemsize
    mult = _sublane_multiple(itemsize)
    lane = _choose_lane(total, mult)
    if lane is None:
        # Element count not a multiple of 128: a (1, N) masked-store block
        # would waste most of each vreg; use the metadata reshape instead.
        return jnp.reshape(x, shape)

    rows = total // lane
    budget_bytes, vmem_limit = _device_budget()
    tile_rows = _choose_tile_rows(rows, lane, itemsize, budget_bytes)

    flat2d = jnp.reshape(x, (rows, lane))                 # metadata-only
    copied = _pallas_tiled_copy(flat2d, tile_rows, vmem_limit)
    return jnp.reshape(copied, shape)                     # metadata-only


if __name__ == "__main__":
    key = jax.random.PRNGKey(0)

    # Typical use: flatten conv features (NCHW) to (batch, features).
    x = jax.random.normal(key, (2, 4, 16, 16), dtype=jnp.float32)
    ref = jnp.reshape(x, (2, 1024))

    # Default path: pure metadata reshape (recommended, zero HBM traffic).
    y_meta = jax.block_until_ready(reshape_forward(x, [2, -1]))
    assert y_meta.shape == (2, 1024) and y_meta.dtype == x.dtype
    assert bool(jnp.array_equal(y_meta, ref))

    # Pallas identity-copy path (force_copy=True) on the same input.
    y_copy = jax.block_until_ready(reshape_forward(x, [2, -1], force_copy=True))
    assert bool(jnp.array_equal(y_copy, ref))

    # Larger case that exercises multi-block tiling (grid >= 2 blocks).
    x2 = jax.random.normal(jax.random.PRNGKey(0), (8, 4, 32, 32), dtype=jnp.float32)
    y2 = jax.block_until_ready(reshape_forward(x2, [8, -1], force_copy=True))
    assert bool(jnp.array_equal(y2, jnp.reshape(x2, (8, 4096))))

    # bf16 case: exercises the dtype-aware sublane packing (16 rows/vreg).
    x4 = jax.random.normal(key, (2, 64, 64), dtype=jnp.bfloat16)
    y4 = jax.block_until_ready(reshape_forward(x4, [-1, 128], force_copy=True))
    assert bool(jnp.array_equal(y4, jnp.reshape(x4, (64, 128))))

    # Non-multiple-of-128 element count: always the pure metadata reshape.
    x3 = jax.random.normal(key, (3, 5, 7), dtype=jnp.float32)      # 105 elems
    y3 = jax.block_until_ready(reshape_forward(x3, [-1], force_copy=True))
    assert bool(jnp.array_equal(y3, jnp.reshape(x3, (105,))))

    print("KERNEL_OK")
</pallas_src>

<mosaic_0001>
module attributes {stable_mosaic.version = 11 : i64} {
  func.func @_copy_kernel(%arg0: i32, %arg1: memref<8x256xf32, #tpu.memory_space<vmem>>, %arg2: memref<8x256xf32, #tpu.memory_space<vmem>>) attributes {dimension_semantics = [#tpu.dimension_semantics<parallel>], iteration_bounds = array<i64: 1>, scalar_prefetch = 0 : i64, scratch_operands = 0 : i64, tpu.core_type = #tpu.core_type<tc>, window_params = [{transform_indices = @transform_0, window_bounds = array<i64: 8, 256>}, {transform_indices = @transform_1, window_bounds = array<i64: 8, 256>}]} {
    %c0 = arith.constant 0 : index
    %c0_0 = arith.constant 0 : index
    %0 = vector.load %arg1[%c0, %c0_0] : memref<8x256xf32, #tpu.memory_space<vmem>>, vector<8x256xf32>
    %c0_1 = arith.constant 0 : index
    %c0_2 = arith.constant 0 : index
    %1 = vector.load %arg2[%c0_1, %c0_2] : memref<8x256xf32, #tpu.memory_space<vmem>>, vector<8x256xf32>
    tpu.vector_store %arg2[%c0_1, %c0_2], %0 {strides = array<i32>} : memref<8x256xf32, #tpu.memory_space<vmem>>, vector<8x256xf32>,
    return
  }
  func.func @transform_0(%arg0: i32) -> (i32, i32) {
    %c0_i32 = arith.constant 0 : i32
    %c0_i32_0 = arith.constant 0 : i32
    return %arg0, %c0_i32 : i32, i32
  }
  func.func @transform_1(%arg0: i32) -> (i32, i32) {
    %c0_i32 = arith.constant 0 : i32
    %c0_i32_0 = arith.constant 0 : i32
    return %arg0, %c0_i32 : i32, i32
  }
}

</mosaic_0001>

<llo_original>
// kernel: tpu_custom_call.1
$region0: #{tpu_custom_call.1}
  #allocation0 [shape = 'u32[]', space=smem, size = 0x4, offset = 0x4, fixed_abs, tag = 'smem constant byte address 0x4 - core index']
  #allocation1 [shape = 'u32[144,128]{1,0:T(1,128)}', space=vmem, size = 0x12000, scoped, tag = 'internal scratch']
  %s0 = inlined_call_operand.hbm [shape: f32[8,256], index: 0, kind: input, shape index: {}]
  %s1 = inlined_call_operand.hbm [shape: f32[8,256], index: 1, kind: output, shape index: {}]
  %s2 = sld [smem:[#allocation0]]
  $region18: #{tpu_custom_call.1} parent=0
    _
  %s4 = ssub.s32 1, %s2
  %s5 = scalar_select 0, %s4, %s2
  $region1: #{tpu_custom_call.1} parent=0
    #allocation2 [shape = 'u8[8192]{0}', space=vmem, size = 0x2000, scoped, tag = 'input window, operand 0, single buffered']
    #allocation3 [shape = 's32[1]{0}', space=sflag, size = 0x4, scoped, tag = 'scoped memory for tpu_custom_call.1']
    #allocation4 [shape = 's32[1]{0}', space=sflag, size = 0x4, scoped, tag = 'scoped memory for tpu_custom_call.1']
    #allocation5 [shape = 'u8[8192]{0}', space=vmem, size = 0x2000, scoped, tag = 'output window, operand 0, single buffered']
    %6 = vsyncpa [#allocation3], 0
    %7 = vsyncpa [#allocation4], 0
    // Predicated region
    $region2: #{tpu_custom_call.1} parent=1 // pred_check
      _
    $region3: #{tpu_custom_call.1} parent=1 // pred_check_branch
      %9 = sbr.rel (0) target = $region5
    $region4: #{tpu_custom_call.1} parent=1 // pred_region
      %s11 = ssub.s32 256, 256
      %12 = vsyncadd [#allocation3], %s11
      %s14 = sshll.u32 [#allocation2], 4
      %s15 = int_to_ptr.vmem [resolvable:$true] %s14
      %17 = dma.hbm_to_vmem [thread:$0]  %s0, 256, %s15, [#allocation3]
    $region5: #{tpu_custom_call.1} parent=1 // pred_fallthru
      _
    // Predicated region
    $region6: #{tpu_custom_call.1} parent=1 // pred_check
      _
    $region7: #{tpu_custom_call.1} parent=1 // pred_check_branch
      %19 = sbr.rel (0) target = $region9
    $region8: #{tpu_custom_call.1} parent=1 // pred_region
      %20 = dma.done [#allocation3], 256
    $region9: #{tpu_custom_call.1} parent=1 // pred_fallthru
      _
    %v21 = vld [vmem:[#allocation2] sm:$0xff]
    %v22 = vld [vmem:[#allocation2 + $0x8] sm:$0xff]
    %23 = vst [vmem:[#allocation5] sm:$0xff] %v21
    %24 = vst [vmem:[#allocation5 + $0x8] sm:$0xff] %v22
    // Predicated region
    $region10: #{tpu_custom_call.1} parent=1 // pred_check
      _
    $region11: #{tpu_custom_call.1} parent=1 // pred_check_branch
      %26 = sbr.rel (0) target = $region13
    $region12: #{tpu_custom_call.1} parent=1 // pred_region
      %s28 = ssub.s32 256, 256
      %29 = vsyncadd [#allocation4], %s28
      %s31 = sshll.u32 [#allocation5], 4
      %s32 = int_to_ptr.vmem [resolvable:$true] %s31
      %34 = dma.vmem_to_hbm [thread:$0]  %s32, 256, %s1, [#allocation4]
    $region13: #{tpu_custom_call.1} parent=1 // pred_fallthru
      _
    // Predicated region
    $region14: #{tpu_custom_call.1} parent=1 // pred_check
      _
    $region15: #{tpu_custom_call.1} parent=1 // pred_check_branch
      %36 = sbr.rel (0) target = $region17
    $region16: #{tpu_custom_call.1} parent=1 // pred_region
      %37 = dma.done [#allocation4], 256
    $region17: #{tpu_custom_call.1} parent=1 // pred_fallthru
      _
    %38 = vsyncpa [#allocation3], 1
    %39 = vsyncpa [#allocation4], 1

</llo_original>
